<compile_context>
chip_gen: v6e
topology: v6e:2x2x1
jax: 0.10.0
libtpu: 0.0.40
codegen_flags: <defaults>
</compile_context>

<pallas_src>
import jax
import jax.numpy as jnp
from jax.experimental import pallas as pl
from jax.experimental.pallas import tpu as pltpu

_SUBLANE = 8
_LANE = 128


def _round_up(x, m):
    return (x + m - 1) // m * m


def _mlp_kernel(xT_ref, w1_ref, b1_ref, w2_ref, b2_ref, o_ref):
    # xT:  [K_pad, TB]   (n_states x batch-tile, batch on lanes)
    # w1:  [H_pad, K_pad]  (PyTorch nn.Linear layout [out, in])
    # b1:  [H_pad, 1]
    # w2:  [A_pad, H_pad]
    # b2:  [A_pad, 1]
    # out: [A_pad, TB]   lane-dense output tile
    h = jnp.dot(w1_ref[...], xT_ref[...], preferred_element_type=jnp.float32)
    h = jnp.maximum(h + b1_ref[...], 0.0)            # bias broadcasts over lanes
    out = jnp.dot(w2_ref[...], h, preferred_element_type=jnp.float32)
    out = out + b2_ref[...]
    o_ref[...] = out.astype(o_ref.dtype)


def net_forward(x, w1, b1, w2, b2, *, block_b=256):
    """Forward pass of Net: relu(x @ w1.T + b1) @ w2.T + b2.

    x:  [B, n_states] f32
    w1: [hidden, n_states], b1: [hidden]     (PyTorch nn.Linear layout)
    w2: [n_actions, hidden], b2: [n_actions]
    """
    B, n_states = x.shape
    hidden, _ = w1.shape
    n_actions, _ = w2.shape

    # Pad feature dims to the sublane granule; batch to the lane-tile size.
    K_pad = _round_up(n_states, _SUBLANE)
    H_pad = _round_up(hidden, _SUBLANE)       # 10 -> 16
    A_pad = _round_up(n_actions, _SUBLANE)    # 2  -> 8
    TB = _round_up(min(block_b, _round_up(B, _LANE)), _LANE)
    B_pad = _round_up(B, TB)
    grid_b = B_pad // TB

    f32 = jnp.float32
    # Lane-dense transposed activations: [n_states_pad, B_pad] (batch on lanes).
    xT = jnp.zeros((K_pad, B_pad), f32).at[:n_states, :B].set(x.T.astype(f32))
    w1p = jnp.zeros((H_pad, K_pad), f32).at[:hidden, :n_states].set(w1.astype(f32))
    b1p = jnp.zeros((H_pad, 1), f32).at[:hidden, 0].set(b1.astype(f32))
    w2p = jnp.zeros((A_pad, H_pad), f32).at[:n_actions, :hidden].set(w2.astype(f32))
    b2p = jnp.zeros((A_pad, 1), f32).at[:n_actions, 0].set(b2.astype(f32))

    flops = 2 * B_pad * (K_pad * H_pad + H_pad * A_pad)
    bytes_accessed = 4 * (K_pad * B_pad + H_pad * K_pad + H_pad
                          + A_pad * H_pad + A_pad + A_pad * B_pad)

    outT = pl.pallas_call(
        _mlp_kernel,
        out_shape=jax.ShapeDtypeStruct((A_pad, B_pad), f32),
        grid=(grid_b,),
        in_specs=[
            pl.BlockSpec((K_pad, TB), lambda i: (0, i)),      # x tile, streamed
            pl.BlockSpec((H_pad, K_pad), lambda i: (0, 0)),   # weights resident
            pl.BlockSpec((H_pad, 1), lambda i: (0, 0)),       # b1 fetched once
            pl.BlockSpec((A_pad, H_pad), lambda i: (0, 0)),
            pl.BlockSpec((A_pad, 1), lambda i: (0, 0)),       # b2 fetched once
        ],
        out_specs=pl.BlockSpec((A_pad, TB), lambda i: (0, i)),
        compiler_params=pltpu.CompilerParams(
            dimension_semantics=("parallel",),   # batch tiles -> both TCs on v7x
        ),
        cost_estimate=pl.CostEstimate(
            flops=flops, transcendentals=0, bytes_accessed=bytes_accessed),
    )(xT, w1p, b1p, w2p, b2p)

    # Strip padding and return [B, n_actions].
    return outT[:n_actions, :B].T


def init_params(key, n_states, n_actions, hidden=10):
    """Mirror the PyTorch module: weights ~ N(0, 0.1) in nn.Linear layout
    [out, in]; biases keep default Linear init U(-1/sqrt(fan_in), +1/sqrt(fan_in))."""
    k1, k2, k3, k4 = jax.random.split(key, 4)
    w1 = 0.1 * jax.random.normal(k1, (hidden, n_states), jnp.float32)
    w2 = 0.1 * jax.random.normal(k2, (n_actions, hidden), jnp.float32)
    bound1 = 1.0 / jnp.sqrt(jnp.float32(n_states))
    bound2 = 1.0 / jnp.sqrt(jnp.float32(hidden))
    b1 = jax.random.uniform(k3, (hidden,), jnp.float32, -bound1, bound1)
    b2 = jax.random.uniform(k4, (n_actions,), jnp.float32, -bound2, bound2)
    return w1, b1, w2, b2


if __name__ == "__main__":
    n_states, n_actions, batch = 4, 2, 512   # 2 batch tiles of 256 -> pipelined grid
    key = jax.random.PRNGKey(0)
    kx, kp = jax.random.split(key)
    x = jax.random.normal(kx, (batch, n_states), jnp.float32)
    w1, b1, w2, b2 = init_params(kp, n_states, n_actions)

    out = net_forward(x, w1, b1, w2, b2, block_b=256)
    jax.block_until_ready(out)

    # Reference check in plain JAX (PyTorch nn.Linear semantics).
    ref = jnp.maximum(x @ w1.T + b1, 0.0) @ w2.T + b2
    assert out.shape == (batch, n_actions)
    assert jnp.allclose(out, ref, atol=1e-5), "mismatch vs reference"
    print("KERNEL_OK")
</pallas_src>

<mosaic_0001>
module attributes {stable_mosaic.version = 11 : i64} {
  func.func @_mlp_kernel(%arg0: i32, %arg1: memref<8x256xf32, #tpu.memory_space<vmem>>, %arg2: memref<16x8xf32, #tpu.memory_space<vmem>>, %arg3: memref<16x1xf32, #tpu.memory_space<vmem>>, %arg4: memref<8x16xf32, #tpu.memory_space<vmem>>, %arg5: memref<8x1xf32, #tpu.memory_space<vmem>>, %arg6: memref<8x256xf32, #tpu.memory_space<vmem>>) attributes {dimension_semantics = [#tpu.dimension_semantics<parallel>], iteration_bounds = array<i64: 2>, scalar_prefetch = 0 : i64, scratch_operands = 0 : i64, tpu.core_type = #tpu.core_type<tc>, window_params = [{transform_indices = @transform_0, window_bounds = array<i64: 8, 256>}, {pipeline_mode = #tpu.pipeline_mode<synchronous>, transform_indices = @transform_1, window_bounds = array<i64: 16, 8>}, {pipeline_mode = #tpu.pipeline_mode<synchronous>, transform_indices = @transform_2, window_bounds = array<i64: 16, 1>}, {pipeline_mode = #tpu.pipeline_mode<synchronous>, transform_indices = @transform_3, window_bounds = array<i64: 8, 16>}, {pipeline_mode = #tpu.pipeline_mode<synchronous>, transform_indices = @transform_4, window_bounds = array<i64: 8, 1>}, {transform_indices = @transform_5, window_bounds = array<i64: 8, 256>}]} {
    %c0 = arith.constant 0 : index
    %c0_0 = arith.constant 0 : index
    %0 = vector.load %arg2[%c0, %c0_0] : memref<16x8xf32, #tpu.memory_space<vmem>>, vector<16x8xf32>
    %c0_1 = arith.constant 0 : index
    %c0_2 = arith.constant 0 : index
    %1 = vector.load %arg1[%c0_1, %c0_2] : memref<8x256xf32, #tpu.memory_space<vmem>>, vector<8x256xf32>
    %cst = arith.constant dense<0.000000e+00> : vector<16x256xf32>
    %2 = tpu.matmul %0, %1, %cst {dimension_numbers = #tpu.dot_dimension_numbers<[1], [0], [0], [1], [0, 0, 1, 1], [], []>} : vector<16x8xf32>, vector<8x256xf32>, vector<16x256xf32> -> vector<16x256xf32>
    %c0_3 = arith.constant 0 : index
    %c0_4 = arith.constant 0 : index
    %3 = vector.load %arg3[%c0_3, %c0_4] : memref<16x1xf32, #tpu.memory_space<vmem>>, vector<16x1xf32>
    %4 = vector.broadcast %3 : vector<16x1xf32> to vector<16x256xf32>
    %5 = arith.addf %2, %4 : vector<16x256xf32>
    %cst_5 = arith.constant 0.000000e+00 : f32
    %6 = vector.broadcast %cst_5 : f32 to vector<16x256xf32>
    %7 = arith.maximumf %5, %6 : vector<16x256xf32>
    %c0_6 = arith.constant 0 : index
    %c0_7 = arith.constant 0 : index
    %8 = vector.load %arg4[%c0_6, %c0_7] : memref<8x16xf32, #tpu.memory_space<vmem>>, vector<8x16xf32>
    %cst_8 = arith.constant dense<0.000000e+00> : vector<8x256xf32>
    %9 = tpu.matmul %8, %7, %cst_8 {dimension_numbers = #tpu.dot_dimension_numbers<[1], [0], [0], [1], [0, 0, 1, 1], [], []>} : vector<8x16xf32>, vector<16x256xf32>, vector<8x256xf32> -> vector<8x256xf32>
    %c0_9 = arith.constant 0 : index
    %c0_10 = arith.constant 0 : index
    %10 = vector.load %arg5[%c0_9, %c0_10] : memref<8x1xf32, #tpu.memory_space<vmem>>, vector<8x1xf32>
    %11 = vector.broadcast %10 : vector<8x1xf32> to vector<8x256xf32>
    %12 = arith.addf %9, %11 : vector<8x256xf32>
    %c0_11 = arith.constant 0 : index
    %c0_12 = arith.constant 0 : index
    %13 = vector.load %arg6[%c0_11, %c0_12] : memref<8x256xf32, #tpu.memory_space<vmem>>, vector<8x256xf32>
    tpu.vector_store %arg6[%c0_11, %c0_12], %12 {strides = array<i32>} : memref<8x256xf32, #tpu.memory_space<vmem>>, vector<8x256xf32>,
    return
  }
  func.func @transform_0(%arg0: i32) -> (i32, i32) {
    %c0_i32 = arith.constant 0 : i32
    %c0_i32_0 = arith.constant 0 : i32
    return %c0_i32, %arg0 : i32, i32
  }
  func.func @transform_1(%arg0: i32) -> (i32, i32) {
    %c0_i32 = arith.constant 0 : i32
    %c0_i32_0 = arith.constant 0 : i32
    %c0_i32_1 = arith.constant 0 : i32
    return %c0_i32, %c0_i32_0 : i32, i32
  }
  func.func @transform_2(%arg0: i32) -> (i32, i32) {
    %c0_i32 = arith.constant 0 : i32
    %c0_i32_0 = arith.constant 0 : i32
    %c0_i32_1 = arith.constant 0 : i32
    return %c0_i32, %c0_i32_0 : i32, i32
  }
  func.func @transform_3(%arg0: i32) -> (i32, i32) {
    %c0_i32 = arith.constant 0 : i32
    %c0_i32_0 = arith.constant 0 : i32
    %c0_i32_1 = arith.constant 0 : i32
    return %c0_i32, %c0_i32_0 : i32, i32
  }
  func.func @transform_4(%arg0: i32) -> (i32, i32) {
    %c0_i32 = arith.constant 0 : i32
    %c0_i32_0 = arith.constant 0 : i32
    %c0_i32_1 = arith.constant 0 : i32
    return %c0_i32, %c0_i32_0 : i32, i32
  }
  func.func @transform_5(%arg0: i32) -> (i32, i32) {
    %c0_i32 = arith.constant 0 : i32
    %c0_i32_0 = arith.constant 0 : i32
    return %c0_i32, %arg0 : i32, i32
  }
}

</mosaic_0001>

<llo_original>
// kernel: tpu_custom_call.1
$region0: #{tpu_custom_call.1}
  #allocation0 [shape = 'u32[]', space=smem, size = 0x4, offset = 0x4, fixed_abs, tag = 'smem constant byte address 0x4 - core index']
  #allocation1 [shape = 'u32[144,128]{1,0:T(1,128)}', space=vmem, size = 0x12000, scoped, tag = 'internal scratch']
  %s0 = inlined_call_operand.vmem [shape: f32[8,512], index: 0, kind: input, shape index: {}]
  %s1 = inlined_call_operand.vmem [shape: f32[16,8], index: 1, kind: input, shape index: {}]
  %s2 = inlined_call_operand.vmem [shape: f32[16,1], index: 2, kind: input, shape index: {}]
  %s3 = inlined_call_operand.vmem [shape: f32[8,16], index: 3, kind: input, shape index: {}]
  %s4 = inlined_call_operand.vmem [shape: f32[8,1], index: 4, kind: input, shape index: {}]
  %s5 = inlined_call_operand.hbm [shape: f32[8,512], index: 5, kind: output, shape index: {}]
  %s6 = sld [smem:[#allocation0]]
  $region53: #{tpu_custom_call.1} parent=0
    _
  %s8 = ssub.s32 1, %s6
  %s9 = scalar_select 0, %s8, %s6
  $region1: #{tpu_custom_call.1} parent=0
    #allocation2 [shape = 'u8[16384]{0}', space=vmem, size = 0x4000, scoped, tag = 'output window, operand 0']
    #allocation3 [shape = 's32[2]{0}', space=sflag, size = 0x8, scoped, tag = 'scoped memory for tpu_custom_call.1']
    %10 = vsyncpa [#allocation3], 0
    %s11 = scalar_lea.sflag [#allocation3], 1
    %12 = vsyncpa %s11, 0
    loop: start=0, step=1, limit=4
    $region2: #{tpu_custom_call.1} parent=1 // loop_pre_header
      _
    $region3: #{tpu_custom_call.1} parent=1 // loop_header
      %s14 = sphi 0, %s18
      %p15 = scmp.ge.s32.totalorder %s14, 4
      %s24 = sphi 0, %s26
      %s27 = sphi 0, %s24
      %s28 = sphi 0, %s27
      %s44 = sphi 0, %s28
      %s48 = sphi 0, %s48
      %s50 = sphi 0, %s48
      %s51 = sphi 0, %s50
      %s65 = sphi 0, %s51
      %s69 = sphi 0, %s69
      %s71 = sphi 0, %s69
      %s72 = sphi 0, %s71
      %s86 = sphi 0, %s72
      %s90 = sphi 0, %s90
      %s92 = sphi 0, %s90
      %s93 = sphi 0, %s92
      %s107 = sphi 0, %s93
      %s111 = sphi 0, %s111
      %s113 = sphi 0, %s111
      %s114 = sphi 0, %s113
      %s128 = sphi 0, %s114
      %s134 = sphi 0, %s136
      %s137 = sphi 0, %s134
      %s138 = sphi 0, %s137
      %s154 = sphi 0, %s138
    $region4: #{tpu_custom_call.1} parent=1 // loop_header_branch
      %17 = sbr.rel (%p15) target = $region8
    $region5: #{tpu_custom_call.1} parent=1 // loop_body
      %s19 = ssub.s32 %s14, 1
      %s20 = ssub.s32 %s14, 2
      %s21 = sadd.s32 %s14, 1
      %s22 = ssub.s32 %s14, %s21
      %p23 = scmp.eq.s32.totalorder %s22, 0
      %s25 = sadd.s32 %s24, 1
      %s26 = scalar_select %p23, %s24, %s25
      %p29 = pneg %p23
      %p30 = scmp.eq.s32.totalorder %s14, 1
      %p31 = por %p29, %p30
      %p32 = scmp.ne.s32.totalorder %s24, %s27
      %p33 = scmp.eq.s32.totalorder %s14, 0
      %p34 = por %p32, %p33
      %p35 = scmp.ne.s32.totalorder %s24, %s27
      %p36 = scmp.eq.s32.totalorder %s19, 1
      %p37 = por %p35, %p36
      %p38 = scmp.ne.s32.totalorder %s27, %s28
      %p39 = scmp.eq.s32.totalorder %s19, 0
      %p40 = por %p38, %p39
      %p41 = scmp.ne.s32.totalorder %s27, %s28
      %p42 = scmp.eq.s32.totalorder %s20, 1
      %p43 = por %p41, %p42
      %p45 = scmp.ne.s32.totalorder %s28, %s44
      %p46 = scmp.eq.s32.totalorder %s20, 0
      %p47 = por %p45, %p46
      %s49 = sadd.s32 %s48, 1
      %p52 = scmp.eq.s32.totalorder %s14, 1
      %p53 = scmp.ne.s32.totalorder %s48, %s50
      %p54 = scmp.eq.s32.totalorder %s14, 0
      %p55 = por %p53, %p54
      %p56 = scmp.ne.s32.totalorder %s48, %s50
      %p57 = scmp.eq.s32.totalorder %s19, 1
      %p58 = por %p56, %p57
      %p59 = scmp.ne.s32.totalorder %s50, %s51
      %p60 = scmp.eq.s32.totalorder %s19, 0
      %p61 = por %p59, %p60
      %p62 = scmp.ne.s32.totalorder %s50, %s51
      %p63 = scmp.eq.s32.totalorder %s20, 1
      %p64 = por %p62, %p63
      %p66 = scmp.ne.s32.totalorder %s51, %s65
      %p67 = scmp.eq.s32.totalorder %s20, 0
      %p68 = por %p66, %p67
      %s70 = sadd.s32 %s69, 1
      %p73 = scmp.eq.s32.totalorder %s14, 1
      %p74 = scmp.ne.s32.totalorder %s69, %s71
      %p75 = scmp.eq.s32.totalorder %s14, 0
      %p76 = por %p74, %p75
      %p77 = scmp.ne.s32.totalorder %s69, %s71
      %p78 = scmp.eq.s32.totalorder %s19, 1
      %p79 = por %p77, %p78
      %p80 = scmp.ne.s32.totalorder %s71, %s72
      %p81 = scmp.eq.s32.totalorder %s19, 0
      %p82 = por %p80, %p81
      %p83 = scmp.ne.s32.totalorder %s71, %s72
      %p84 = scmp.eq.s32.totalorder %s20, 1
      %p85 = por %p83, %p84
      %p87 = scmp.ne.s32.totalorder %s72, %s86
      %p88 = scmp.eq.s32.totalorder %s20, 0
      %p89 = por %p87, %p88
      %s91 = sadd.s32 %s90, 1
      %p94 = scmp.eq.s32.totalorder %s14, 1
      %p95 = scmp.ne.s32.totalorder %s90, %s92
      %p96 = scmp.eq.s32.totalorder %s14, 0
      %p97 = por %p95, %p96
      %p98 = scmp.ne.s32.totalorder %s90, %s92
      %p99 = scmp.eq.s32.totalorder %s19, 1
      %p100 = por %p98, %p99
      %p101 = scmp.ne.s32.totalorder %s92, %s93
      %p102 = scmp.eq.s32.totalorder %s19, 0
      %p103 = por %p101, %p102
      %p104 = scmp.ne.s32.totalorder %s92, %s93
      %p105 = scmp.eq.s32.totalorder %s20, 1
      %p106 = por %p104, %p105
      %p108 = scmp.ne.s32.totalorder %s93, %s107
      %p109 = scmp.eq.s32.totalorder %s20, 0
      %p110 = por %p108, %p109
      %s112 = sadd.s32 %s111, 1
      %p115 = scmp.eq.s32.totalorder %s14, 1
      %p116 = scmp.ne.s32.totalorder %s111, %s113
      %p117 = scmp.eq.s32.totalorder %s14, 0
      %p118 = por %p116, %p117
      %p119 = scmp.ne.s32.totalorder %s111, %s113
      %p120 = scmp.eq.s32.totalorder %s19, 1
      %p121 = por %p119, %p120
      %p122 = scmp.ne.s32.totalorder %s113, %s114
      %p123 = scmp.eq.s32.totalorder %s19, 0
      %p124 = por %p122, %p123
      %p125 = scmp.ne.s32.totalorder %s113, %s114
      %p126 = scmp.eq.s32.totalorder %s20, 1
      %p127 = por %p125, %p126
      %p129 = scmp.ne.s32.totalorder %s114, %s128
      %p130 = scmp.eq.s32.totalorder %s20, 0
      %p131 = por %p129, %p130
      %s132 = ssub.s32 %s14, %s21
      %p133 = scmp.eq.s32.totalorder %s132, 0
      %s135 = sadd.s32 %s134, 1
      %s136 = scalar_select %p133, %s134, %s135
      %p139 = pneg %p133
      %p140 = scmp.eq.s32.totalorder %s14, 1
      %p141 = por %p139, %p140
      %p142 = scmp.ne.s32.totalorder %s134, %s137
      %p143 = scmp.eq.s32.totalorder %s14, 0
      %p144 = por %p142, %p143
      %p145 = scmp.ne.s32.totalorder %s134, %s137
      %p146 = scmp.eq.s32.totalorder %s19, 1
      %p147 = por %p145, %p146
      %p148 = scmp.ne.s32.totalorder %s137, %s138
      %p149 = scmp.eq.s32.totalorder %s19, 0
      %p150 = por %p148, %p149
      %p151 = scmp.ne.s32.totalorder %s137, %s138
      %p152 = scmp.eq.s32.totalorder %s20, 1
      %p153 = por %p151, %p152
      %p155 = scmp.ne.s32.totalorder %s138, %s154
      %p156 = scmp.eq.s32.totalorder %s20, 0
      %p157 = por %p155, %p156
      %p158 = scmp.le.s32.totalorder 1, %s14
      %p159 = scmp.lt.s32.totalorder %s14, 3
      %p160 = pnand %p158, %p159
      %p161 = pneg %p160
      // Predicated region
      $region9: #{tpu_custom_call.1} parent=5 // pred_check
        _
      $region10: #{tpu_custom_call.1} parent=5 // pred_check_branch
        %163 = sbr.rel (%p160) target = $region12
      $region11: #{tpu_custom_call.1} parent=5 // pred_region
        %s164 = ssub.s32 %s14, 1
        // Predicated region
        $region13: #{tpu_custom_call.1} parent=11 // pred_check
          %p165 = pneg %p61
        $region14: #{tpu_custom_call.1} parent=11 // pred_check_branch
          %167 = sbr.rel (%p165) target = $region16
        $region15: #{tpu_custom_call.1} parent=11 // pred_region
          _
        $region16: #{tpu_custom_call.1} parent=11 // pred_fallthru
          _
        // Predicated region
        $region17: #{tpu_custom_call.1} parent=11 // pred_check
          %p168 = pneg %p82
        $region18: #{tpu_custom_call.1} parent=11 // pred_check_branch
          %170 = sbr.rel (%p168) target = $region20
        $region19: #{tpu_custom_call.1} parent=11 // pred_region
          _
        $region20: #{tpu_custom_call.1} parent=11 // pred_fallthru
          _
        // Predicated region
        $region21: #{tpu_custom_call.1} parent=11 // pred_check
          %p171 = pneg %p103
        $region22: #{tpu_custom_call.1} parent=11 // pred_check_branch
          %173 = sbr.rel (%p171) target = $region24
        $region23: #{tpu_custom_call.1} parent=11 // pred_region
          _
        $region24: #{tpu_custom_call.1} parent=11 // pred_fallthru
          _
        // Predicated region
        $region25: #{tpu_custom_call.1} parent=11 // pred_check
          %p174 = pneg %p124
        $region26: #{tpu_custom_call.1} parent=11 // pred_check_branch
          %176 = sbr.rel (%p174) target = $region28
        $region27: #{tpu_custom_call.1} parent=11 // pred_region
          _
        $region28: #{tpu_custom_call.1} parent=11 // pred_fallthru
          _
      $region12: #{tpu_custom_call.1} parent=5 // pred_fallthru
        _
      %p177 = scmp.lt.s32.totalorder %s14, 2
      // Predicated region
      $region29: #{tpu_custom_call.1} parent=5 // pred_check
        %p178 = pneg %p177
      $region30: #{tpu_custom_call.1} parent=5 // pred_check_branch
        %180 = sbr.rel (%p178) target = $region32
      $region31: #{tpu_custom_call.1} parent=5 // pred_region
        // Predicated region
        $region33: #{tpu_custom_call.1} parent=31 // pred_check
          %p181 = pneg %p34
        $region34: #{tpu_custom_call.1} parent=31 // pred_check_branch
          %183 = sbr.rel (%p181) target = $region36
        $region35: #{tpu_custom_call.1} parent=31 // pred_region
          %s184 = smul.u32 2, %s14
          %p185 = scmp.lt.s32.totalorder %s184, 3
          %s186 = scalar_select %p185, %s184, 3
          %s187 = smul.addr %s186, 8
          %s188 = scalar_lea.vmem %s0, %s187
          %s189 = smul.u32 2, %s14
        $region36: #{tpu_custom_call.1} parent=31 // pred_fallthru
          _
      $region32: #{tpu_custom_call.1} parent=5 // pred_fallthru
        _
      %p190 = scmp.le.s32.totalorder 1, %s14
      %p191 = scmp.lt.s32.totalorder %s14, 3
      %p192 = pnand %p190, %p191
      %p193 = pneg %p192
      // Predicated region
      $region37: #{tpu_custom_call.1} parent=5 // pred_check
        _
      $region38: #{tpu_custom_call.1} parent=5 // pred_check_branch
        %195 = sbr.rel (%p192) target = $region40
      $region39: #{tpu_custom_call.1} parent=5 // pred_region
        %s196 = ssub.s32 %s14, 1
        %s197 = smul.u32 2, %s19
        %p198 = scmp.lt.s32.totalorder %s197, 3
        %s199 = scalar_select %p198, %s197, 3
        %s200 = smul.addr %s199, 8
        %s201 = scalar_lea.vmem %s0, %s200
        %p202 = pneg %p40
        %p203 = pneg %p37
        %p204 = pneg %p61
        %p205 = pneg %p58
        %p206 = pneg %p82
        %p207 = pneg %p79
        %p208 = pneg %p103
        %p209 = pneg %p100
        %p210 = pneg %p124
        %p211 = pneg %p121
        %p212 = pneg %p150
        %p213 = pneg %p147
        %s214 = sand.u32 %s137, 1
        %s215 = scalar_lea.sflag [#allocation3], %s214
        %s216 = sand.u32 %s137, 1
        %s217 = smul.addr %s216, 16
        %s218 = scalar_lea.vmem [#allocation2], %s217
        %s219 = smul.u32 2, %s19
        %p220 = scmp.lt.s32.totalorder %s219, 3
        %s221 = scalar_select %p220, %s219, 3
        %s222 = smul.addr %s221, 8
        %s223 = scalar_lea.vmem %s0, %s222
        %s224 = smul.u32 2, %s19
        %s225 = smul.u32 2, %s19
        %v226 = vld [vmem:[%s1] sm:$0xff]
        %v227 = vld [vmem:[%s1 + $0x8] sm:$0xff]
        %v228 = vld [vmem:[%s223] sm:$0xff]
        %v229 = vld [vmem:[%s223 + $0x8] sm:$0xff]
        %v230 = vld [vmem:[%s2] sm:$0xff]
        %v231 = vld [vmem:[%s2 + $0x8] sm:$0xff]
        %233 = vset.pattern.permute.xlu0 0
        %234 = vperm.xlu0 %233, %v230
        %v235 = vpop.permute.xlu0 %234
        %238 = vset.pattern.permute.xlu0 0
        %239 = vperm.xlu0 %238, %v231
        %v240 = vpop.permute.xlu0 %239
        %vm242 = vcmask 64512
        %v244 = vsel %vm242, %v226, 0
        %v247 = vsel %vm242, %v227, 0
        %249 = vmatprep.subr.mxu0 0.0
        %250 = vmatpush1.msra.mxu0 0.0
        %251 = vmatprep.subr.mxu0 0.0
        %252 = vmatpush1.msra.mxu0 0.0
        %253 = vmatprep.subr.mxu0 0.0
        %254 = vmatpush1.msra.mxu0 0.0
        %255 = vmatprep.subr.mxu0 0.0
        %256 = vmatpush1.msra.mxu0 0.0
        %257 = vmatprep.subr.mxu0 0.0
        %258 = vmatpush1.msra.mxu0 0.0
        %259 = vmatprep.subr.mxu0 0.0
        %260 = vmatpush1.msra.mxu0 0.0
        %261 = vmatprep.subr.mxu0 0.0
        %262 = vmatpush1.msra.mxu0 0.0
        %263 = vmatprep.subr.mxu0 0.0
        %264 = vmatpush1.msra.mxu0 0.0
        %265 = vmatprep.subr.mxu0 0.0
        %266 = vmatpush1.msra.mxu0 0.0
        %267 = vmatprep.subr.mxu0 0.0
        %268 = vmatpush1.msra.mxu0 0.0
        %269 = vmatprep.subr.mxu0 0.0
        %270 = vmatpush1.msra.mxu0 0.0
        %271 = vmatprep.subr.mxu0 0.0
        %272 = vmatpush1.msra.mxu0 0.0
        %273 = vmatprep.subr.mxu0 0.0
        %274 = vmatpush1.msra.mxu0 0.0
        %275 = vmatprep.subr.mxu0 0.0
        %276 = vmatpush1.msra.mxu0 0.0
        %277 = vmatprep.subr.mxu0 0.0
        %278 = vmatpush1.msra.mxu0 0.0
        %279 = vmatprep.subr.mxu0 %v229
        %280 = vmatpush1.msra.mxu0 %v228
        %281 = vmatprep.subr.mxu0 0.0
        %282 = vmatpush2.msra.mxu0 0.0
        %283 = vmatprep.subr.mxu0 0.0
        %284 = vmatpush2.msra.mxu0 0.0
        %285 = vmatprep.subr.mxu0 0.0
        %286 = vmatpush2.msra.mxu0 0.0
        %287 = vmatprep.subr.mxu0 0.0
        %288 = vmatpush2.msra.mxu0 0.0
        %289 = vmatprep.subr.mxu0 0.0
        %290 = vmatpush2.msra.mxu0 0.0
        %291 = vmatprep.subr.mxu0 0.0
        %292 = vmatpush2.msra.mxu0 0.0
        %293 = vmatprep.subr.mxu0 0.0
        %294 = vmatpush2.msra.mxu0 0.0
        %295 = vmatprep.subr.mxu0 0.0
        %296 = vmatpush2.msra.mxu0 0.0
        %297 = vmatprep.subr.mxu0 0.0
        %298 = vmatpush2.msra.mxu0 0.0
        %299 = vmatprep.subr.mxu0 0.0
        %300 = vmatpush2.msra.mxu0 0.0
        %301 = vmatprep.subr.mxu0 0.0
        %302 = vmatpush2.msra.mxu0 0.0
        %303 = vmatprep.subr.mxu0 0.0
        %304 = vmatpush2.msra.mxu0 0.0
        %305 = vmatprep.subr.mxu0 0.0
        %306 = vmatpush2.msra.mxu0 0.0
        %307 = vmatprep.subr.mxu0 0.0
        %308 = vmatpush2.msra.mxu0 0.0
        %309 = vmatprep.subr.mxu0 0.0
        %310 = vmatpush2.msra.mxu0 0.0
        %311 = vmatprep.subr.mxu0 0.0
        %312 = vmatpush2.msra.mxu0 0.0
        %313 = vmatprep.mubr.f32.mxu0 0.0
        %314 = vmatmul.mubr.f32.gmra.mxu0 %v244
        %v315 = vpop.f32.mrf.mxu0
        %v316 = vadd.f32 %v235, %v315
        %v317 = vpop.f32.mrf.mxu0
        %v318 = vadd.f32 %v235, %v317
        %319 = vmatprep.mubr.f32.mxu0 0.0
        %320 = vmatmul.mubr.f32.gmra.mxu0 %v247
        %v321 = vpop.f32.mrf.mxu0
        %v322 = vadd.f32 %v240, %v321
        %v323 = vpop.f32.mrf.mxu0
        %v324 = vadd.f32 %v240, %v323
        %325 = vdwg.mxu0
        %v326 = vmax.f32 %v316, 0.0
        %v327 = vmax.f32 %v318, 0.0
        %v328 = vmax.f32 %v322, 0.0
        %v329 = vmax.f32 %v324, 0.0
        %v330 = vld [vmem:[%s3] sm:$0xff]
        %v331 = vld [vmem:[%s4] sm:$0xff]
        %333 = vset.pattern.permute.xlu0 0
        %334 = vperm.xlu0 %333, %v331
        %v335 = vpop.permute.xlu0 %334
        %vm337 = vcmask 130048
        %v339 = vsel %vm337, %v330, 0
        %341 = vmatprep.subr.mxu0 0.0
        %342 = vmatpush1.msra.mxu0 0.0
        %343 = vmatprep.subr.mxu0 0.0
        %344 = vmatpush1.msra.mxu0 0.0
        %345 = vmatprep.subr.mxu0 0.0
        %346 = vmatpush1.msra.mxu0 0.0
        %347 = vmatprep.subr.mxu0 0.0
        %348 = vmatpush1.msra.mxu0 0.0
        %349 = vmatprep.subr.mxu0 0.0
        %350 = vmatpush1.msra.mxu0 0.0
        %351 = vmatprep.subr.mxu0 0.0
        %352 = vmatpush1.msra.mxu0 0.0
        %353 = vmatprep.subr.mxu0 0.0
        %354 = vmatpush1.msra.mxu0 0.0
        %355 = vmatprep.subr.mxu0 0.0
        %356 = vmatpush1.msra.mxu0 0.0
        %357 = vmatprep.subr.mxu0 0.0
        %358 = vmatpush1.msra.mxu0 0.0
        %359 = vmatprep.subr.mxu0 0.0
        %360 = vmatpush1.msra.mxu0 0.0
        %361 = vmatprep.subr.mxu0 0.0
        %362 = vmatpush1.msra.mxu0 0.0
        %363 = vmatprep.subr.mxu0 0.0
        %364 = vmatpush1.msra.mxu0 0.0
        %365 = vmatprep.subr.mxu0 0.0
        %366 = vmatpush1.msra.mxu0 0.0
        %367 = vmatprep.subr.mxu0 0.0
        %368 = vmatpush1.msra.mxu0 0.0
        %369 = vmatprep.subr.mxu0 %v329
        %370 = vmatpush1.msra.mxu0 %v328
        %371 = vmatprep.subr.mxu0 %v327
        %372 = vmatpush1.msra.mxu0 %v326
        %373 = vmatprep.subr.mxu0 0.0
        %374 = vmatpush2.msra.mxu0 0.0
        %375 = vmatprep.subr.mxu0 0.0
        %376 = vmatpush2.msra.mxu0 0.0
        %377 = vmatprep.subr.mxu0 0.0
        %378 = vmatpush2.msra.mxu0 0.0
        %379 = vmatprep.subr.mxu0 0.0
        %380 = vmatpush2.msra.mxu0 0.0
        %381 = vmatprep.subr.mxu0 0.0
        %382 = vmatpush2.msra.mxu0 0.0
        %383 = vmatprep.subr.mxu0 0.0
        %384 = vmatpush2.msra.mxu0 0.0
        %385 = vmatprep.subr.mxu0 0.0
        %386 = vmatpush2.msra.mxu0 0.0
        %387 = vmatprep.subr.mxu0 0.0
        %388 = vmatpush2.msra.mxu0 0.0
        %389 = vmatprep.subr.mxu0 0.0
        %390 = vmatpush2.msra.mxu0 0.0
        %391 = vmatprep.subr.mxu0 0.0
        %392 = vmatpush2.msra.mxu0 0.0
        %393 = vmatprep.subr.mxu0 0.0
        %394 = vmatpush2.msra.mxu0 0.0
        %395 = vmatprep.subr.mxu0 0.0
        %396 = vmatpush2.msra.mxu0 0.0
        %397 = vmatprep.subr.mxu0 0.0
        %398 = vmatpush2.msra.mxu0 0.0
        %399 = vmatprep.subr.mxu0 0.0
        %400 = vmatpush2.msra.mxu0 0.0
        %401 = vmatprep.subr.mxu0 0.0
        %402 = vmatpush2.msra.mxu0 0.0
        %403 = vmatprep.subr.mxu0 0.0
        %404 = vmatpush2.msra.mxu0 0.0
        %405 = vmatprep.mubr.f32.mxu0 0.0
        %406 = vmatmul.mubr.f32.gmra.mxu0 %v339
        %v407 = vpop.f32.mrf.mxu0
        %v408 = vadd.f32 %v335, %v407
        %v409 = vpop.f32.mrf.mxu0
        %v410 = vadd.f32 %v335, %v409
        %411 = vdwg.mxu0
        %412 = vst [vmem:[%s218] sm:$0xff] %v408
        %413 = vst [vmem:[%s218 + $0x8] sm:$0xff] %v410
        %s414 = sand.u32 %s137, 1
        %s415 = scalar_lea.sflag [#allocation3], %s414
        %s416 = sand.u32 %s137, 1
        %s417 = smul.addr %s416, 16
        %s418 = scalar_lea.vmem [#allocation2], %s417
        // Predicated region
        $region41: #{tpu_custom_call.1} parent=39 // pred_check
          %p419 = pneg %p147
        $region42: #{tpu_custom_call.1} parent=39 // pred_check_branch
          %421 = sbr.rel (%p419) target = $region44
        $region43: #{tpu_custom_call.1} parent=39 // pred_region
          %s422 = smul.u32 2, %s19
          %s424 = ssub.s32 256, 256
          %425 = vsyncadd %s415, %s424
          %s426 = smul.addr %s422, 128
          %s427 = scalar_lea.hbm %s5, %s426
          %s429 = sshll.u32 %s418, 4
          %s430 = int_to_ptr.vmem [resolvable:$true] %s429
          %432 = dma.vmem_to_hbm [thread:$0]  %s430, 256, %s427, %s415
        $region44: #{tpu_custom_call.1} parent=39 // pred_fallthru
          _
      $region40: #{tpu_custom_call.1} parent=5 // pred_fallthru
        _
      %p433 = scmp.le.s32.totalorder 2, %s14
      // Predicated region
      $region45: #{tpu_custom_call.1} parent=5 // pred_check
        %p434 = pneg %p433
      $region46: #{tpu_custom_call.1} parent=5 // pred_check_branch
        %436 = sbr.rel (%p434) target = $region48
      $region47: #{tpu_custom_call.1} parent=5 // pred_region
        %s437 = ssub.s32 %s14, 2
        // Predicated region
        $region49: #{tpu_custom_call.1} parent=47 // pred_check
          %p438 = pneg %p153
        $region50: #{tpu_custom_call.1} parent=47 // pred_check_branch
          %440 = sbr.rel (%p438) target = $region52
        $region51: #{tpu_custom_call.1} parent=47 // pred_region
          %s441 = sand.u32 %s138, 1
          %s442 = scalar_lea.sflag [#allocation3], %s441
          %s443 = sand.u32 %s138, 1
          %s444 = smul.addr %s443, 16
          %s445 = scalar_lea.vmem [#allocation2], %s444
          %446 = dma.done %s442, 256
        $region52: #{tpu_custom_call.1} parent=47 // pred_fallthru
          _
      $region48: #{tpu_custom_call.1} parent=5 // pred_fallthru
        _
    $region6: #{tpu_custom_call.1} parent=1 // loop_footer
      %s18 = sadd.s32 1, %s14
    $region7: #{tpu_custom_call.1} parent=1 // loop_footer_branch
      %13 = sbr.rel target = $region3
    $region8: #{tpu_custom_call.1} parent=1 // loop_exit
      _
    %447 = vsyncpa [#allocation3], 1
    %s448 = scalar_lea.sflag [#allocation3], 1
    %449 = vsyncpa %s448, 1

</llo_original>
